<compile_context>
chip_gen: v7x
topology: tpu7x:2x2x1
jax: 0.10.0
libtpu: 0.0.40
codegen_flags: <defaults>
</compile_context>

<pallas_src>
import jax
import jax.numpy as jnp
from jax.experimental import pallas as pl
from jax.experimental.pallas import tpu as pltpu


def _pred_kernel_rowsum(u_ref, v_ref, y_ref):
    # Elementwise multiply on the VPU, reduce over the lane axis; accumulate in f32
    # regardless of the input dtype (bf16-safe).
    prod = u_ref[...].astype(jnp.float32) * v_ref[...].astype(jnp.float32)   # (TB, D)
    y_ref[...] = jnp.sum(prod, axis=-1, keepdims=True).astype(y_ref.dtype)   # (TB, 1)


def _make_pred_kernel_folded(d, k):
    """Kernel for the lane-densified layout: each VMEM row holds k batch rows of width
    d (k*d == 128).  Segmented row-reduce via the (otherwise idle) MXU against a
    block-diagonal indicator matrix, keeping the VPU/XLU/store path off the critical
    path and making the output tile (TB, k) instead of a single masked lane."""
    dk = d * k

    def kernel(u_ref, v_ref, y_ref):
        prod = u_ref[...].astype(jnp.float32) * v_ref[...].astype(jnp.float32)  # (TB, k*d)
        # seg[i, j] = 1 iff lane i belongs to folded slot j (i // d == j).
        rows = jax.lax.broadcasted_iota(jnp.int32, (dk, k), 0) // d
        cols = jax.lax.broadcasted_iota(jnp.int32, (dk, k), 1)
        seg = (rows == cols).astype(jnp.float32)                                # (k*d, k)
        y_ref[...] = jnp.dot(prod, seg,
                             preferred_element_type=jnp.float32).astype(y_ref.dtype)

    return kernel


def pred_layer(u, v, *, block_b=None,
               vmem_budget_bytes=8 * 1024 * 1024,
               target_step_in_bytes=4 * 1024 * 1024):
    """
    u: (batch, 1, dim)   v: (batch, 1, dim)   ->   y: (batch, 1)
    Matches torch PredLayer: y = sum(u * v, dim=-1).
    """
    assert u.shape == v.shape and u.ndim == 3 and u.shape[1] == 1, \
        "u, v must both be (B, 1, D)"
    B, _, D = u.shape
    dtype = u.dtype
    itemsize = jnp.dtype(dtype).itemsize

    # Sublane packing granularity: 8 rows (4-byte), 16 (2-byte), 32 (1-byte).
    sub = max(8, 32 // itemsize)

    # --- lane densification for small D ----------------------------------------
    # Only when it is a free row-major reshape (no padding copy needed).
    k = 1
    if D < 128 and 128 % D == 0:
        kc = 128 // D
        if B >= kc and B % kc == 0:
            k = kc
    Bk, Dk = B // k, D * k

    u2 = u.reshape(Bk, Dk)
    v2 = v.reshape(Bk, Dk)

    # --- tile-size chooser (bytes-based) ----------------------------------------
    # Aim for ~target_step_in_bytes of input DMA per grid step, bounded by a VMEM
    # budget counting: 2 inputs x 2 buffers, 2 lane-padded (TB,128) output buffers,
    # and one f32 row for the multiply temporary.  8 MiB stays well inside the
    # default scoped-VMEM limits on v5e (16 MiB), v6e (32 MiB) and v7x (32 MiB).
    per_row_in = 2 * Dk * itemsize
    per_row_vmem = 2 * per_row_in + 2 * 128 * itemsize + Dk * 4
    if block_b is None:
        tb = min(target_step_in_bytes // per_row_in,
                 max(1, vmem_budget_bytes // per_row_vmem))
    else:
        tb = max(1, block_b)
    tb = max(sub, (tb // sub) * sub)            # sublane-align (also fixes user block_b)
    b_sub = ((Bk + sub - 1) // sub) * sub
    tb = min(tb, b_sub)                         # never wider than the (rounded) batch

    # Ragged edge handled by Pallas block masking: no wrapper-side zero-pad copies.
    grid = (pl.cdiv(Bk, tb),)

    # Only for the huge-D edge case where even a sublane-minimum tile exceeds the
    # conservative budget.
    # TODO(synk): for D so large that this still overflows physical VMEM, add an
    #             "arbitrary" grid axis over D with a (TB, 128) f32 scratch accumulator.
    vmem_limit = None
    footprint = tb * per_row_vmem + (2 << 20)
    if footprint > (12 << 20):
        vmem_limit = min(footprint, 48 << 20)

    cost = pl.CostEstimate(
        flops=2 * B * D,
        transcendentals=0,
        bytes_accessed=2 * B * D * itemsize + B * itemsize,
    )

    kernel = _pred_kernel_rowsum if k == 1 else _make_pred_kernel_folded(D, k)

    y2 = pl.pallas_call(
        kernel,
        out_shape=jax.ShapeDtypeStruct((Bk, k), dtype),
        grid_spec=pltpu.PrefetchScalarGridSpec(
            num_scalar_prefetch=0,
            grid=grid,
            in_specs=[
                pl.BlockSpec((tb, Dk), lambda i: (i, 0)),
                pl.BlockSpec((tb, Dk), lambda i: (i, 0)),
            ],
            out_specs=pl.BlockSpec((tb, k), lambda i: (i, 0)),
        ),
        compiler_params=pltpu.CompilerParams(
            # Independent batch tiles.
            # TODO(synk): on v7x, benchmark dimension_semantics=(pltpu.CORE_PARALLEL,)
            #             so both TensorCores share the grid; plain "parallel" is the
            #             safe, guaranteed-to-lower default on single-TC v5e/v6e.
            dimension_semantics=("parallel",),
            vmem_limit_bytes=vmem_limit,
        ),
        cost_estimate=cost,
    )(u2, v2)

    return y2.reshape(B, 1)


if __name__ == "__main__":
    def ref(u, v):
        return jnp.sum(u.astype(jnp.float32) * v.astype(jnp.float32), axis=-1)

    key = jax.random.PRNGKey(0)

    # Small shape consistent with the module spec: u, v are (batch, 1, dim).
    B, D = 2, 32
    ku, kv = jax.random.split(key)
    u = jax.random.normal(ku, (B, 1, D), dtype=jnp.float32)
    v = jax.random.normal(kv, (B, 1, D), dtype=jnp.float32)
    y = pred_layer(u, v)
    jax.block_until_ready(y)
    assert y.shape == (B, 1)
    assert jnp.allclose(y, ref(u, v), atol=1e-4, rtol=1e-5)

    # Multi-tile pipelined path, masked ragged edges (no padding copies), and the
    # lane-densified small-D path (D=64 -> k=2, D=32 -> k=4).
    for Bt, Dt in [(2048, 256), (100, 64), (12800, 32)]:
        kt = jax.random.PRNGKey(Bt + Dt)
        ku, kv = jax.random.split(kt)
        ut = jax.random.normal(ku, (Bt, 1, Dt), dtype=jnp.float32)
        vt = jax.random.normal(kv, (Bt, 1, Dt), dtype=jnp.float32)
        yt = pred_layer(ut, vt)
        jax.block_until_ready(yt)
        assert yt.shape == (Bt, 1)
        assert jnp.allclose(yt, ref(ut, vt), atol=1e-3, rtol=1e-4)

    # bf16 inputs: kernel accumulates in f32 and casts back to bf16.
    Bb, Db = 64, 128
    ku, kv = jax.random.split(jax.random.PRNGKey(7))
    ub = jax.random.normal(ku, (Bb, 1, Db), dtype=jnp.float32).astype(jnp.bfloat16)
    vb = jax.random.normal(kv, (Bb, 1, Db), dtype=jnp.float32).astype(jnp.bfloat16)
    yb = pred_layer(ub, vb)
    jax.block_until_ready(yb)
    assert yb.shape == (Bb, 1)
    assert jnp.allclose(yb.astype(jnp.float32), ref(ub, vb), atol=5e-2, rtol=5e-2)

    print("KERNEL_OK")
</pallas_src>

<mosaic_0001>
module attributes {stable_mosaic.version = 11 : i64} {
  func.func @_pred_kernel_rowsum(%arg0: i32, %arg1: memref<8x32xf32, #tpu.memory_space<vmem>>, %arg2: memref<8x32xf32, #tpu.memory_space<vmem>>, %arg3: memref<8x1xf32, #tpu.memory_space<vmem>>) attributes {dimension_semantics = [#tpu.dimension_semantics<parallel>], iteration_bounds = array<i64: 1>, scalar_prefetch = 0 : i64, scratch_operands = 0 : i64, tpu.core_type = #tpu.core_type<tc>, window_params = [{transform_indices = @transform_0, window_bounds = array<i64: 8, 32>}, {transform_indices = @transform_1, window_bounds = array<i64: 8, 32>}, {transform_indices = @transform_2, window_bounds = array<i64: 8, 1>}]} {
    %c0 = arith.constant 0 : index
    %c0_0 = arith.constant 0 : index
    %0 = vector.load %arg1[%c0, %c0_0] : memref<8x32xf32, #tpu.memory_space<vmem>>, vector<8x32xf32>
    %c0_1 = arith.constant 0 : index
    %c0_2 = arith.constant 0 : index
    %1 = vector.load %arg2[%c0_1, %c0_2] : memref<8x32xf32, #tpu.memory_space<vmem>>, vector<8x32xf32>
    %2 = arith.mulf %0, %1 : vector<8x32xf32>
    %cst = arith.constant dense<0.000000e+00> : vector<8xf32>
    %3 = vector.multi_reduction <add>, %2, %cst [1] : vector<8x32xf32> to vector<8xf32>
    %4 = vector.shape_cast %3 : vector<8xf32> to vector<8x1xf32>
    %c0_3 = arith.constant 0 : index
    %c0_4 = arith.constant 0 : index
    %5 = vector.load %arg3[%c0_3, %c0_4] : memref<8x1xf32, #tpu.memory_space<vmem>>, vector<8x1xf32>
    tpu.vector_store %arg3[%c0_3, %c0_4], %4 {strides = array<i32>} : memref<8x1xf32, #tpu.memory_space<vmem>>, vector<8x1xf32>,
    return
  }
  func.func @transform_0(%arg0: i32) -> (i32, i32) {
    %c0_i32 = arith.constant 0 : i32
    %c0_i32_0 = arith.constant 0 : i32
    return %arg0, %c0_i32 : i32, i32
  }
  func.func @transform_1(%arg0: i32) -> (i32, i32) {
    %c0_i32 = arith.constant 0 : i32
    %c0_i32_0 = arith.constant 0 : i32
    return %arg0, %c0_i32 : i32, i32
  }
  func.func @transform_2(%arg0: i32) -> (i32, i32) {
    %c0_i32 = arith.constant 0 : i32
    %c0_i32_0 = arith.constant 0 : i32
    return %arg0, %c0_i32 : i32, i32
  }
}

</mosaic_0001>

<llo_original>
// kernel: tpu_custom_call.1
$region0: #{tpu_custom_call.1}
  #allocation0 [shape = 'u32[]', space=smem, size = 0x4, offset = 0x4, fixed_abs, tag = 'smem constant byte address 0x4 - core index']
  #allocation1 [shape = 'u32[144,128]{1,0:T(1,128)}', space=vmem, size = 0x12000, scoped, tag = 'internal scratch']
  %s0 = inlined_call_operand.hbm [shape: f32[2,32], index: 0, kind: input, shape index: {}]
  %s1 = inlined_call_operand.vmem [shape: f32[2,32], index: 1, kind: input, shape index: {}]
  %s2 = inlined_call_operand.vmem [shape: f32[2,1], index: 2, kind: output, shape index: {}]
  %s3 = sld [smem:[#allocation0]]
  $region52: #{tpu_custom_call.1} parent=0
    _
  %s5 = ssub.s32 1, %s3
  %s6 = scalar_select 0, %s5, %s3
  $region1: #{tpu_custom_call.1} parent=0
    #allocation2 [shape = 'u8[4096]{0}', space=vmem, size = 0x1000, scoped, tag = 'input window, operand 0, single buffered']
    #allocation3 [shape = 's32[1]{0}', space=sflag, size = 0x4, scoped, tag = 'scoped memory for tpu_custom_call.1']
    #allocation4 [shape = 'u8[4096]{0}', space=vmem, size = 0x1000, scoped, tag = 'output window, operand 0, single buffered']
    %7 = vsyncpa [#allocation3], 0
    // Predicated region
    $region2: #{tpu_custom_call.1} parent=1 // pred_check
      _
    $region3: #{tpu_custom_call.1} parent=1 // pred_check_branch
      %9 = sbr.rel (0) target = $region5
    $region4: #{tpu_custom_call.1} parent=1 // pred_region
      %s11 = ssub.s32 128, 32
      %12 = vsyncadd [#allocation3], %s11
      %s13 = sshll.u32 [#allocation2], 4
      %s14 = int_to_ptr.vmem [resolvable:$true] %s13
      %19 = dma.hbm_to_vmem [thread:$0]  %s0, 32, %s14, [#allocation3], 32, 32, 2
    $region5: #{tpu_custom_call.1} parent=1 // pred_fallthru
      _
    // Predicated region
    $region6: #{tpu_custom_call.1} parent=1 // pred_check
      _
    $region7: #{tpu_custom_call.1} parent=1 // pred_check_branch
      %21 = sbr.rel (0) target = $region9
    $region8: #{tpu_custom_call.1} parent=1 // pred_region
      _
    $region9: #{tpu_custom_call.1} parent=1 // pred_fallthru
      _
    // Predicated region
    $region10: #{tpu_custom_call.1} parent=1 // pred_check
      _
    $region11: #{tpu_custom_call.1} parent=1 // pred_check_branch
      %23 = sbr.rel (0) target = $region13
    $region12: #{tpu_custom_call.1} parent=1 // pred_region
      %24 = dma.done [#allocation3], 128
    $region13: #{tpu_custom_call.1} parent=1 // pred_fallthru
      _
    %v25 = vld [vmem:[#allocation2] sm:$0xff]
    %v26 = vld [vmem:[%s1] sm:$0xff]
    %v27 = vmul.f32 %v25, %v26
    %vm28 = vcmask 261120
    %v29 = vsel %vm28, %v27, 0.0
    %30 = vadd.xlane.f32.xlu0 %v29
    %v31 = vpop.xlane.xlu0 %30
    %vm32 = vcmask 7168
    %33 = vst.msk [vmem:[#allocation4] sm:$0xff] %vm32, %v31
    // Predicated region
    $region14: #{tpu_custom_call.1} parent=1 // pred_check
      _
    $region15: #{tpu_custom_call.1} parent=1 // pred_check_branch
      %35 = sbr.rel (0) target = $region17
    $region16: #{tpu_custom_call.1} parent=1 // pred_region
      // Predicated region
      $region18: #{tpu_custom_call.1} parent=16 // pred_check
        _
      $region19: #{tpu_custom_call.1} parent=16 // pred_check_branch
        %37 = sbr.rel (0) target = $region21
      $region20: #{tpu_custom_call.1} parent=16 // pred_region
        // Predicated region
        $region22: #{tpu_custom_call.1} parent=20 // pred_check
          _
        $region23: #{tpu_custom_call.1} parent=20 // pred_check_branch
          %39 = sbr.rel target = $region25
        $region24: #{tpu_custom_call.1} parent=20 // pred_region
          // Predicated region
          $region37: #{tpu_custom_call.1} parent=24 // pred_check
            _
          $region38: #{tpu_custom_call.1} parent=24 // pred_check_branch
            %54 = sbr.rel (0) target = $region40
          $region39: #{tpu_custom_call.1} parent=24 // pred_region
            loop: start=0, step=1, limit=1
            $region41: #{tpu_custom_call.1} parent=39 // loop_pre_header
              _
            $region42: #{tpu_custom_call.1} parent=39 // loop_header
              %s57 = sphi 0, %s61
              %p58 = scmp.ge.s32.totalorder %s57, 1
              %s62 = sphi [#allocation4], [#allocation4]
              %s63 = sphi %s2, %s2
            $region43: #{tpu_custom_call.1} parent=39 // loop_header_branch
              %60 = sbr.rel (%p58) target = $region47
            $region44: #{tpu_custom_call.1} parent=39 // loop_body
              %v64 = vld [vmem:[%s62] sm:$0x3]
              %65 = vst [vmem:[%s63] sm:$0x3] %v64
            $region45: #{tpu_custom_call.1} parent=39 // loop_footer
              %s61 = sadd.s32 1, %s57
            $region46: #{tpu_custom_call.1} parent=39 // loop_footer_branch
              %56 = sbr.rel target = $region42
            $region47: #{tpu_custom_call.1} parent=39 // loop_exit
              _
          $region40: #{tpu_custom_call.1} parent=24 // pred_fallthru
            _
        $region25: #{tpu_custom_call.1} parent=20 // pred_fallthru
          _
        // Predicated region
        $region26: #{tpu_custom_call.1} parent=20 // pred_check
          _
        $region27: #{tpu_custom_call.1} parent=20 // pred_check_branch
          %41 = sbr.rel (0) target = $region29
        $region28: #{tpu_custom_call.1} parent=20 // pred_region
          loop: start=0, step=1, limit=1
          $region30: #{tpu_custom_call.1} parent=28 // loop_pre_header
            _
          $region31: #{tpu_custom_call.1} parent=28 // loop_header
            %s44 = sphi 0, %s48
            %p45 = scmp.ge.s32.totalorder %s44, 1
            %s49 = sphi [#allocation4], [#allocation4]
            %s50 = sphi %s2, %s2
          $region32: #{tpu_custom_call.1} parent=28 // loop_header_branch
            %47 = sbr.rel (%p45) target = $region36
          $region33: #{tpu_custom_call.1} parent=28 // loop_body
            %v51 = vld [vmem:[%s49] sm:$0x3]
            %52 = vst [vmem:[%s50] sm:$0x3] %v51
          $region34: #{tpu_custom_call.1} parent=28 // loop_footer
            %s48 = sadd.s32 1, %s44
          $region35: #{tpu_custom_call.1} parent=28 // loop_footer_branch
            %43 = sbr.rel target = $region31
          $region36: #{tpu_custom_call.1} parent=28 // loop_exit
            _
        $region29: #{tpu_custom_call.1} parent=20 // pred_fallthru
          _
      $region21: #{tpu_custom_call.1} parent=16 // pred_fallthru
        _
      %66 = vnop
    $region17: #{tpu_custom_call.1} parent=1 // pred_fallthru
      _
    // Predicated region
    $region48: #{tpu_custom_call.1} parent=1 // pred_check
      _
    $region49: #{tpu_custom_call.1} parent=1 // pred_check_branch
      %68 = sbr.rel (0) target = $region51
    $region50: #{tpu_custom_call.1} parent=1 // pred_region
      _
    $region51: #{tpu_custom_call.1} parent=1 // pred_fallthru
      _
    %69 = vsyncpa [#allocation3], 1

</llo_original>
